<compile_context>
chip_gen: v6e
topology: v6e:2x2x1
jax: 0.10.0
libtpu: 0.0.40
codegen_flags: <defaults>
</compile_context>

<pallas_src>
import jax
import jax.numpy as jnp
from jax.experimental import pallas as pl
from jax.experimental.pallas import tpu as pltpu

_LANE = 128


def _make_joint_kernel(num_class, fg_set):
    """Build the kernel with channels unrolled statically (gate chosen at trace time)."""

    def kernel(pred_ref, out_ref):
        # pred_ref: (1, 1+C, TR, 128) native dtype; out_ref: (1, C, TR, 128).
        # Binary foreground logit -> sigmoid (exp on EUP, add/div on VPU).
        bi = pred_ref[0, 0, :, :].astype(jnp.float32)
        fgp = 1.0 / (1.0 + jnp.exp(-bi))
        bgp = 1.0 - fgp

        # Per-class logits, cast once to f32 for stable compute.
        cls = [pred_ref[0, 1 + c, :, :].astype(jnp.float32) for c in range(num_class)]

        # Channel max (static unroll -> VPU maximum, no XLU reduction).
        m = cls[0]
        for c in range(1, num_class):
            m = jnp.maximum(m, cls[c])

        # Fused gate * exp; the softmax denominator cancels with the final /Z.
        w = []
        s = None
        for c in range(num_class):
            e = jnp.exp(cls[c] - m)
            wc = (fgp * e) if c in fg_set else (bgp * e)
            w.append(wc)
            s = wc if s is None else s + wc

        # Exact reciprocal kept on purpose: kernel is HBM-bound on v5e/v6e and
        # approx=True would loosen the numerical contract vs the reference.
        inv = 1.0 / s
        for c in range(num_class):
            out_ref[0, c, :, :] = (w[c] * inv).astype(out_ref.dtype)

    return kernel


def _pick_tile_rows(rows, target):
    """Largest spatial-row tile that divides `rows` and satisfies the (8,128) rule."""
    if rows <= target:
        return rows  # single spatial tile per batch element (== full array dim)
    for tr in range(target, 7, -1):
        if rows % tr == 0 and tr % 8 == 0:
            return tr
    # TODO(synk): no multiple-of-8 divisor <= target; fall back to one full-R tile
    # (still well under VMEM for realistic segmentation shapes) instead of padding.
    return rows


def joint_loss_forward(pred, target=None, foreground_index=(1, 2, 3),
                       ignore_index=255, tile_rows=256):
    """Pallas implementation of JointLoss.forward's computation (returns p_ci).

    pred: (B, 1 + num_class, H, W); channel 0 is the binary foreground logit.
    """
    assert isinstance(ignore_index, int)
    B, C1, H, W = pred.shape
    C = C1 - 1
    if target is not None:
        assert target.shape[0] == B and target.shape[-2:] == (H, W), \
            "The shape of pred doesn't match the shape of target"

    S = H * W
    R = pl.cdiv(S, _LANE)
    s_pad = R * _LANE

    pred3 = pred.reshape(B, C1, S)  # native dtype: reshape is free, no f32 upcast
    needs_pad = s_pad != S
    if needs_pad:
        # TODO(synk): only hit when H*W is not a multiple of 128; padded columns
        # produce finite values and are sliced off below.
        pred3 = jnp.pad(pred3, ((0, 0), (0, 0), (0, s_pad - S)))

    tr = _pick_tile_rows(R, tile_rows)
    pred4 = pred3.reshape(B, C1, R, _LANE)

    fg_set = frozenset(int(i) for i in foreground_index)
    kernel = _make_joint_kernel(C, fg_set)

    out = pl.pallas_call(
        kernel,
        out_shape=jax.ShapeDtypeStruct((B, C, R, _LANE), pred.dtype),
        grid_spec=pltpu.PrefetchScalarGridSpec(
            num_scalar_prefetch=0,
            grid=(B, R // tr),
            in_specs=[pl.BlockSpec((1, C1, tr, _LANE), lambda b, r: (b, 0, r, 0))],
            out_specs=pl.BlockSpec((1, C, tr, _LANE), lambda b, r: (b, 0, r, 0)),
        ),
        compiler_params=pltpu.CompilerParams(
            dimension_semantics=("parallel", "parallel")),
    )(pred4)

    if needs_pad:
        p_ci = out.reshape(B, C, s_pad)[:, :, :S].reshape(B, C, H, W)
    else:
        p_ci = out.reshape(B, C, H, W)
    return p_ci


def _reference_forward(pred, foreground_index=(1, 2, 3)):
    """Pure-JAX reference of the same effective semantics (for checking)."""
    bi = pred[:, 0:1].astype(jnp.float32)
    cls = pred[:, 1:].astype(jnp.float32)
    fgp = jax.nn.sigmoid(bi)
    clsp = jax.nn.softmax(cls, axis=1)
    C = clsp.shape[1]
    mask = jnp.asarray(
        [1.0 if c in set(foreground_index) else 0.0 for c in range(C)],
        dtype=jnp.float32,
    ).reshape(1, C, 1, 1)
    joint = jnp.where(mask > 0.5, fgp * clsp, (1.0 - fgp) * clsp)
    z = jnp.sum(joint, axis=1, keepdims=True)
    return joint / z


if __name__ == "__main__":
    key = jax.random.PRNGKey(0)
    k_pred, k_tgt = jax.random.split(key)

    B, num_class, H, W = 2, 4, 16, 16
    pred = jax.random.normal(k_pred, (B, 1 + num_class, H, W), dtype=jnp.float32)
    target = jax.random.randint(k_tgt, (B, H, W), 0, num_class, dtype=jnp.int32)

    # float32 path
    p_ci = joint_loss_forward(pred, target, foreground_index=(1, 2, 3))
    p_ci = jax.block_until_ready(p_ci)

    ref = _reference_forward(pred, foreground_index=(1, 2, 3))
    assert p_ci.shape == (B, num_class, H, W)
    assert jnp.allclose(p_ci, ref, atol=1e-5, rtol=1e-5), "mismatch vs reference (f32)"
    assert jnp.allclose(jnp.sum(p_ci, axis=1), 1.0, atol=1e-5)

    # native-dtype (bf16) I/O path: DMA bf16, compute f32 in-kernel, emit bf16
    pred_bf16 = pred.astype(jnp.bfloat16)
    p_bf16 = joint_loss_forward(pred_bf16, target, foreground_index=(1, 2, 3))
    p_bf16 = jax.block_until_ready(p_bf16)
    ref_bf16 = _reference_forward(pred_bf16, foreground_index=(1, 2, 3))
    assert p_bf16.dtype == jnp.bfloat16
    assert jnp.allclose(p_bf16.astype(jnp.float32), ref_bf16, atol=1e-2, rtol=1e-2), \
        "mismatch vs reference (bf16)"

    print("KERNEL_OK")
</pallas_src>

<mosaic_0001>
module attributes {stable_mosaic.version = 11 : i64} {
  func.func @kernel(%arg0: i32, %arg1: i32, %arg2: memref<1x5x2x128xf32, #tpu.memory_space<vmem>>, %arg3: memref<1x4x2x128xf32, #tpu.memory_space<vmem>>) attributes {dimension_semantics = [#tpu.dimension_semantics<parallel>, #tpu.dimension_semantics<parallel>], iteration_bounds = array<i64: 2, 1>, scalar_prefetch = 0 : i64, scratch_operands = 0 : i64, tpu.core_type = #tpu.core_type<tc>, window_params = [{transform_indices = @transform_0, window_bounds = array<i64: 1, 5, 2, 128>}, {transform_indices = @transform_1, window_bounds = array<i64: 1, 4, 2, 128>}]} {
    %c0 = arith.constant 0 : index
    %c0_0 = arith.constant 0 : index
    %c0_1 = arith.constant 0 : index
    %c0_2 = arith.constant 0 : index
    %0 = vector.load %arg2[%c0, %c0_0, %c0_1, %c0_2] : memref<1x5x2x128xf32, #tpu.memory_space<vmem>>, vector<1x1x2x128xf32>
    %1 = vector.shape_cast %0 : vector<1x1x2x128xf32> to vector<2x128xf32>
    %cst = arith.constant 0.000000e+00 : f32
    %2 = vector.broadcast %cst : f32 to vector<2x128xf32>
    %3 = arith.subf %2, %1 : vector<2x128xf32>
    %4 = math.exp %3 : vector<2x128xf32>
    %cst_3 = arith.constant 1.000000e+00 : f32
    %5 = vector.broadcast %cst_3 : f32 to vector<2x128xf32>
    %6 = arith.addf %5, %4 : vector<2x128xf32>
    %cst_4 = arith.constant 1.000000e+00 : f32
    %7 = vector.broadcast %cst_4 : f32 to vector<2x128xf32>
    %8 = arith.divf %7, %6 : vector<2x128xf32>
    %cst_5 = arith.constant 1.000000e+00 : f32
    %9 = vector.broadcast %cst_5 : f32 to vector<2x128xf32>
    %10 = arith.subf %9, %8 : vector<2x128xf32>
    %c0_6 = arith.constant 0 : index
    %c1 = arith.constant 1 : index
    %c0_7 = arith.constant 0 : index
    %c0_8 = arith.constant 0 : index
    %11 = vector.load %arg2[%c0_6, %c1, %c0_7, %c0_8] : memref<1x5x2x128xf32, #tpu.memory_space<vmem>>, vector<1x1x2x128xf32>
    %12 = vector.shape_cast %11 : vector<1x1x2x128xf32> to vector<2x128xf32>
    %c0_9 = arith.constant 0 : index
    %c2 = arith.constant 2 : index
    %c0_10 = arith.constant 0 : index
    %c0_11 = arith.constant 0 : index
    %13 = vector.load %arg2[%c0_9, %c2, %c0_10, %c0_11] : memref<1x5x2x128xf32, #tpu.memory_space<vmem>>, vector<1x1x2x128xf32>
    %14 = vector.shape_cast %13 : vector<1x1x2x128xf32> to vector<2x128xf32>
    %c0_12 = arith.constant 0 : index
    %c3 = arith.constant 3 : index
    %c0_13 = arith.constant 0 : index
    %c0_14 = arith.constant 0 : index
    %15 = vector.load %arg2[%c0_12, %c3, %c0_13, %c0_14] : memref<1x5x2x128xf32, #tpu.memory_space<vmem>>, vector<1x1x2x128xf32>
    %16 = vector.shape_cast %15 : vector<1x1x2x128xf32> to vector<2x128xf32>
    %c0_15 = arith.constant 0 : index
    %c4 = arith.constant 4 : index
    %c0_16 = arith.constant 0 : index
    %c0_17 = arith.constant 0 : index
    %17 = vector.load %arg2[%c0_15, %c4, %c0_16, %c0_17] : memref<1x5x2x128xf32, #tpu.memory_space<vmem>>, vector<1x1x2x128xf32>
    %18 = vector.shape_cast %17 : vector<1x1x2x128xf32> to vector<2x128xf32>
    %19 = arith.maximumf %12, %14 : vector<2x128xf32>
    %20 = arith.maximumf %19, %16 : vector<2x128xf32>
    %21 = arith.maximumf %20, %18 : vector<2x128xf32>
    %22 = arith.subf %12, %21 : vector<2x128xf32>
    %23 = math.exp %22 : vector<2x128xf32>
    %24 = arith.mulf %10, %23 : vector<2x128xf32>
    %25 = arith.subf %14, %21 : vector<2x128xf32>
    %26 = math.exp %25 : vector<2x128xf32>
    %27 = arith.mulf %8, %26 : vector<2x128xf32>
    %28 = arith.addf %24, %27 : vector<2x128xf32>
    %29 = arith.subf %16, %21 : vector<2x128xf32>
    %30 = math.exp %29 : vector<2x128xf32>
    %31 = arith.mulf %8, %30 : vector<2x128xf32>
    %32 = arith.addf %28, %31 : vector<2x128xf32>
    %33 = arith.subf %18, %21 : vector<2x128xf32>
    %34 = math.exp %33 : vector<2x128xf32>
    %35 = arith.mulf %8, %34 : vector<2x128xf32>
    %36 = arith.addf %32, %35 : vector<2x128xf32>
    %cst_18 = arith.constant 1.000000e+00 : f32
    %37 = vector.broadcast %cst_18 : f32 to vector<2x128xf32>
    %38 = arith.divf %37, %36 : vector<2x128xf32>
    %39 = arith.mulf %24, %38 : vector<2x128xf32>
    %c0_19 = arith.constant 0 : index
    %c0_20 = arith.constant 0 : index
    %c0_21 = arith.constant 0 : index
    %c0_22 = arith.constant 0 : index
    %40 = vector.load %arg3[%c0_19, %c0_20, %c0_21, %c0_22] : memref<1x4x2x128xf32, #tpu.memory_space<vmem>>, vector<1x1x2x128xf32>
    %41 = vector.shape_cast %40 : vector<1x1x2x128xf32> to vector<2x128xf32>
    %42 = vector.shape_cast %39 : vector<2x128xf32> to vector<1x1x2x128xf32>
    tpu.vector_store %arg3[%c0_19, %c0_20, %c0_21, %c0_22], %42 {strides = array<i32>} : memref<1x4x2x128xf32, #tpu.memory_space<vmem>>, vector<1x1x2x128xf32>,
    %43 = arith.mulf %27, %38 : vector<2x128xf32>
    %c0_23 = arith.constant 0 : index
    %c1_24 = arith.constant 1 : index
    %c0_25 = arith.constant 0 : index
    %c0_26 = arith.constant 0 : index
    %44 = vector.load %arg3[%c0_23, %c1_24, %c0_25, %c0_26] : memref<1x4x2x128xf32, #tpu.memory_space<vmem>>, vector<1x1x2x128xf32>
    %45 = vector.shape_cast %44 : vector<1x1x2x128xf32> to vector<2x128xf32>
    %46 = vector.shape_cast %43 : vector<2x128xf32> to vector<1x1x2x128xf32>
    tpu.vector_store %arg3[%c0_23, %c1_24, %c0_25, %c0_26], %46 {strides = array<i32>} : memref<1x4x2x128xf32, #tpu.memory_space<vmem>>, vector<1x1x2x128xf32>,
    %47 = arith.mulf %31, %38 : vector<2x128xf32>
    %c0_27 = arith.constant 0 : index
    %c2_28 = arith.constant 2 : index
    %c0_29 = arith.constant 0 : index
    %c0_30 = arith.constant 0 : index
    %48 = vector.load %arg3[%c0_27, %c2_28, %c0_29, %c0_30] : memref<1x4x2x128xf32, #tpu.memory_space<vmem>>, vector<1x1x2x128xf32>
    %49 = vector.shape_cast %48 : vector<1x1x2x128xf32> to vector<2x128xf32>
    %50 = vector.shape_cast %47 : vector<2x128xf32> to vector<1x1x2x128xf32>
    tpu.vector_store %arg3[%c0_27, %c2_28, %c0_29, %c0_30], %50 {strides = array<i32>} : memref<1x4x2x128xf32, #tpu.memory_space<vmem>>, vector<1x1x2x128xf32>,
    %51 = arith.mulf %35, %38 : vector<2x128xf32>
    %c0_31 = arith.constant 0 : index
    %c3_32 = arith.constant 3 : index
    %c0_33 = arith.constant 0 : index
    %c0_34 = arith.constant 0 : index
    %52 = vector.load %arg3[%c0_31, %c3_32, %c0_33, %c0_34] : memref<1x4x2x128xf32, #tpu.memory_space<vmem>>, vector<1x1x2x128xf32>
    %53 = vector.shape_cast %52 : vector<1x1x2x128xf32> to vector<2x128xf32>
    %54 = vector.shape_cast %51 : vector<2x128xf32> to vector<1x1x2x128xf32>
    tpu.vector_store %arg3[%c0_31, %c3_32, %c0_33, %c0_34], %54 {strides = array<i32>} : memref<1x4x2x128xf32, #tpu.memory_space<vmem>>, vector<1x1x2x128xf32>,
    return
  }
  func.func @transform_0(%arg0: i32, %arg1: i32) -> (i32, i32, i32, i32) {
    %c0_i32 = arith.constant 0 : i32
    %c0_i32_0 = arith.constant 0 : i32
    %c0_i32_1 = arith.constant 0 : i32
    return %arg0, %c0_i32, %arg1, %c0_i32_0 : i32, i32, i32, i32
  }
  func.func @transform_1(%arg0: i32, %arg1: i32) -> (i32, i32, i32, i32) {
    %c0_i32 = arith.constant 0 : i32
    %c0_i32_0 = arith.constant 0 : i32
    %c0_i32_1 = arith.constant 0 : i32
    return %arg0, %c0_i32, %arg1, %c0_i32_0 : i32, i32, i32, i32
  }
}

</mosaic_0001>

<llo_original>
// kernel: tpu_custom_call.1
$region0: #{tpu_custom_call.1}
  #allocation0 [shape = 'u32[]', space=smem, size = 0x4, offset = 0x4, fixed_abs, tag = 'smem constant byte address 0x4 - core index']
  #allocation1 [shape = 'u32[144,128]{1,0:T(1,128)}', space=vmem, size = 0x12000, scoped, tag = 'internal scratch']
  %s0 = inlined_call_operand.hbm [shape: f32[2,5,2,128], index: 0, kind: input, shape index: {}]
  %s1 = inlined_call_operand.hbm [shape: f32[2,4,2,128], index: 1, kind: output, shape index: {}]
  %s2 = sld [smem:[#allocation0]]
  $region41: #{tpu_custom_call.1} parent=0
    _
  %s4 = ssub.s32 1, %s2
  %s5 = scalar_select 0, %s4, %s2
  $region1: #{tpu_custom_call.1} parent=0
    #allocation2 [shape = 'u8[10240]{0}', space=vmem, size = 0x2800, scoped, tag = 'input window, operand 0']
    #allocation3 [shape = 's32[2]{0}', space=sflag, size = 0x8, scoped, tag = 'scoped memory for tpu_custom_call.1']
    #allocation4 [shape = 's32[2]{0}', space=sflag, size = 0x8, scoped, tag = 'scoped memory for tpu_custom_call.1']
    #allocation5 [shape = 'u8[8192]{0}', space=vmem, size = 0x2000, scoped, tag = 'output window, operand 0']
    %6 = vsyncpa [#allocation3], 0
    %s7 = scalar_lea.sflag [#allocation3], 1
    %8 = vsyncpa %s7, 0
    %9 = vsyncpa [#allocation4], 0
    %s10 = scalar_lea.sflag [#allocation4], 1
    %11 = vsyncpa %s10, 0
    loop: start=0, step=1, limit=4
    $region2: #{tpu_custom_call.1} parent=1 // loop_pre_header
      _
    $region3: #{tpu_custom_call.1} parent=1 // loop_header
      %s13 = sphi 0, %s17
      %p14 = scmp.ge.s32.totalorder %s13, 4
      %s20 = sphi 0, %s32
      %s21 = sphi 0, %s28
      %s22 = sphi 0, %s20
      %s23 = sphi 0, %s21
      %s24 = sphi 0, %s22
      %s25 = sphi 0, %s23
      %s37 = sphi 0, %s39
      %s40 = sphi 0, %s37
      %s41 = sphi 0, %s40
      %s57 = sphi 0, %s41
      %s65 = sphi 0, %s67
      %s68 = sphi 0, %s65
      %s69 = sphi 0, %s68
      %s85 = sphi 0, %s69
    $region4: #{tpu_custom_call.1} parent=1 // loop_header_branch
      %16 = sbr.rel (%p14) target = $region8
    $region5: #{tpu_custom_call.1} parent=1 // loop_body
      %s18 = ssub.s32 %s13, 1
      %s19 = ssub.s32 %s13, 2
      %s26 = sadd.s32 1, %s21
      %p27 = scmp.ge.s32.totalorder %s26, 1
      %s28 = scalar_select %p27, 0, %s26
      %s29 = sadd.s32 1, %s20
      %s30 = scalar_select %p27, %s29, %s20
      %p31 = scmp.ge.s32.totalorder %s30, 2
      %s32 = scalar_select %p31, 0, %s30
      %s33 = ssub.s32 %s20, %s32
      %s34 = ssub.s32 %s21, %s28
      %s35 = sor.u32 %s33, %s34
      %p36 = scmp.eq.s32.totalorder %s35, 0
      %s38 = sadd.s32 %s37, 1
      %s39 = scalar_select %p36, %s37, %s38
      %p42 = pneg %p36
      %p43 = scmp.eq.s32.totalorder %s13, 1
      %p44 = por %p42, %p43
      %p45 = scmp.ne.s32.totalorder %s37, %s40
      %p46 = scmp.eq.s32.totalorder %s13, 0
      %p47 = por %p45, %p46
      %p48 = scmp.ne.s32.totalorder %s37, %s40
      %p49 = scmp.eq.s32.totalorder %s18, 1
      %p50 = por %p48, %p49
      %p51 = scmp.ne.s32.totalorder %s40, %s41
      %p52 = scmp.eq.s32.totalorder %s18, 0
      %p53 = por %p51, %p52
      %p54 = scmp.ne.s32.totalorder %s40, %s41
      %p55 = scmp.eq.s32.totalorder %s19, 1
      %p56 = por %p54, %p55
      %p58 = scmp.ne.s32.totalorder %s41, %s57
      %p59 = scmp.eq.s32.totalorder %s19, 0
      %p60 = por %p58, %p59
      %s61 = ssub.s32 %s20, %s32
      %s62 = ssub.s32 %s21, %s28
      %s63 = sor.u32 %s61, %s62
      %p64 = scmp.eq.s32.totalorder %s63, 0
      %s66 = sadd.s32 %s65, 1
      %s67 = scalar_select %p64, %s65, %s66
      %p70 = pneg %p64
      %p71 = scmp.eq.s32.totalorder %s13, 1
      %p72 = por %p70, %p71
      %p73 = scmp.ne.s32.totalorder %s65, %s68
      %p74 = scmp.eq.s32.totalorder %s13, 0
      %p75 = por %p73, %p74
      %p76 = scmp.ne.s32.totalorder %s65, %s68
      %p77 = scmp.eq.s32.totalorder %s18, 1
      %p78 = por %p76, %p77
      %p79 = scmp.ne.s32.totalorder %s68, %s69
      %p80 = scmp.eq.s32.totalorder %s18, 0
      %p81 = por %p79, %p80
      %p82 = scmp.ne.s32.totalorder %s68, %s69
      %p83 = scmp.eq.s32.totalorder %s19, 1
      %p84 = por %p82, %p83
      %p86 = scmp.ne.s32.totalorder %s69, %s85
      %p87 = scmp.eq.s32.totalorder %s19, 0
      %p88 = por %p86, %p87
      %p89 = scmp.le.s32.totalorder 1, %s13
      %p90 = scmp.lt.s32.totalorder %s13, 3
      %p91 = pnand %p89, %p90
      %p92 = pneg %p91
      // Predicated region
      $region9: #{tpu_custom_call.1} parent=5 // pred_check
        _
      $region10: #{tpu_custom_call.1} parent=5 // pred_check_branch
        %94 = sbr.rel (%p91) target = $region12
      $region11: #{tpu_custom_call.1} parent=5 // pred_region
        %s95 = ssub.s32 %s13, 1
      $region12: #{tpu_custom_call.1} parent=5 // pred_fallthru
        _
      %p96 = scmp.lt.s32.totalorder %s13, 2
      // Predicated region
      $region13: #{tpu_custom_call.1} parent=5 // pred_check
        %p97 = pneg %p96
      $region14: #{tpu_custom_call.1} parent=5 // pred_check_branch
        %99 = sbr.rel (%p97) target = $region16
      $region15: #{tpu_custom_call.1} parent=5 // pred_region
        // Predicated region
        $region17: #{tpu_custom_call.1} parent=15 // pred_check
          %p100 = pneg %p47
        $region18: #{tpu_custom_call.1} parent=15 // pred_check_branch
          %102 = sbr.rel (%p100) target = $region20
        $region19: #{tpu_custom_call.1} parent=15 // pred_region
          %s103 = sand.u32 %s37, 1
          %s104 = scalar_lea.sflag [#allocation3], %s103
          %s105 = sand.u32 %s37, 1
          %s106 = smul.addr %s105, 10
          %s107 = scalar_lea.vmem [#allocation2], %s106
          %s109 = ssub.s32 160, 160
          %110 = vsyncadd %s104, %s109
          %s111 = smul.addr %s20, 5
          %s112 = sadd.s32 %s21, %s111
          %s113 = smul.addr %s112, 32
          %s114 = scalar_lea.hbm %s0, %s113
          %s115 = sshll.u32 %s107, 4
          %s116 = int_to_ptr.vmem [resolvable:$true] %s115
          %121 = dma.hbm_to_vmem [thread:$0]  %s114, 160, %s116, %s104, 32, 32, 2
        $region20: #{tpu_custom_call.1} parent=15 // pred_fallthru
          _
      $region16: #{tpu_custom_call.1} parent=5 // pred_fallthru
        _
      %p122 = scmp.le.s32.totalorder 1, %s13
      %p123 = scmp.lt.s32.totalorder %s13, 3
      %p124 = pnand %p122, %p123
      %p125 = pneg %p124
      // Predicated region
      $region21: #{tpu_custom_call.1} parent=5 // pred_check
        _
      $region22: #{tpu_custom_call.1} parent=5 // pred_check_branch
        %127 = sbr.rel (%p124) target = $region24
      $region23: #{tpu_custom_call.1} parent=5 // pred_region
        %s128 = ssub.s32 %s13, 1
        %s129 = sand.u32 %s40, 1
        %s130 = scalar_lea.sflag [#allocation3], %s129
        %s131 = sand.u32 %s40, 1
        %s132 = smul.addr %s131, 10
        %s133 = scalar_lea.vmem [#allocation2], %s132
        // Predicated region
        $region25: #{tpu_custom_call.1} parent=23 // pred_check
          %p134 = pneg %p53
        $region26: #{tpu_custom_call.1} parent=23 // pred_check_branch
          %136 = sbr.rel (%p134) target = $region28
        $region27: #{tpu_custom_call.1} parent=23 // pred_region
          %137 = dma.done %s130, 160
        $region28: #{tpu_custom_call.1} parent=23 // pred_fallthru
          _
        %s138 = sand.u32 %s40, 1
        %s139 = scalar_lea.sflag [#allocation3], %s138
        %s140 = sand.u32 %s40, 1
        %s141 = smul.addr %s140, 10
        %s142 = scalar_lea.vmem [#allocation2], %s141
        %p143 = pneg %p53
        %p144 = pneg %p50
        %p145 = pneg %p81
        %p146 = pneg %p78
        %s147 = sand.u32 %s68, 1
        %s148 = scalar_lea.sflag [#allocation4], %s147
        %s149 = sand.u32 %s68, 1
        %s150 = smul.addr %s149, 8
        %s151 = scalar_lea.vmem [#allocation5], %s150
        %v152 = vld [vmem:[%s133] sm:$0x3]
        %v153 = vsub.f32 0.0, %v152
        %v154 = vmul.f32 %v153, 1.442695
        %v155 = vpow.pop %v154
        %v156 = vadd.f32 %v155, 1.0
        %v157 = vrcp.pop %v156
        %v158 = vmul.f32 1.0, %v157
        %v159 = vsub.f32 1.0, %v158
        %s160 = scalar_lea.vmem %s133, 2 [#allocation2]
        %v161 = vld [vmem:[%s160] sm:$0x3]
        %s162 = scalar_lea.vmem %s133, 4 [#allocation2]
        %v163 = vld [vmem:[%s162] sm:$0x3]
        %s164 = scalar_lea.vmem %s133, 6 [#allocation2]
        %v165 = vld [vmem:[%s164] sm:$0x3]
        %s166 = scalar_lea.vmem %s133, 8 [#allocation2]
        %v167 = vld [vmem:[%s166] sm:$0x3]
        %v168 = vmax.f32 %v161, %v163
        %v169 = vmax.f32 %v168, %v165
        %v170 = vmax.f32 %v169, %v167
        %v171 = vsub.f32 %v161, %v170
        %v172 = vmul.f32 %v171, 1.442695
        %v173 = vpow.pop %v172
        %v174 = vmul.f32 %v159, %v173
        %v175 = vsub.f32 %v163, %v170
        %v176 = vmul.f32 %v175, 1.442695
        %v177 = vpow.pop %v176
        %v178 = vmul.f32 %v158, %v177
        %v179 = vadd.f32 %v174, %v178
        %v180 = vsub.f32 %v165, %v170
        %v181 = vmul.f32 %v180, 1.442695
        %v182 = vpow.pop %v181
        %v183 = vmul.f32 %v158, %v182
        %v184 = vadd.f32 %v179, %v183
        %v185 = vsub.f32 %v167, %v170
        %v186 = vmul.f32 %v185, 1.442695
        %v187 = vpow.pop %v186
        %v188 = vmul.f32 %v158, %v187
        %v189 = vadd.f32 %v184, %v188
        %v190 = vrcp.pop %v189
        %v191 = vmul.f32 1.0, %v190
        %v192 = vmul.f32 %v174, %v191
        %193 = vst [vmem:[%s151] sm:$0x3] %v192
        %v194 = vmul.f32 %v178, %v191
        %s195 = scalar_lea.vmem %s151, 2 [#allocation5]
        %196 = vst [vmem:[%s195] sm:$0x3] %v194
        %v197 = vmul.f32 %v183, %v191
        %s198 = scalar_lea.vmem %s151, 4 [#allocation5]
        %199 = vst [vmem:[%s198] sm:$0x3] %v197
        %v200 = vmul.f32 %v188, %v191
        %s201 = scalar_lea.vmem %s151, 6 [#allocation5]
        %202 = vst [vmem:[%s201] sm:$0x3] %v200
        %s203 = sand.u32 %s68, 1
        %s204 = scalar_lea.sflag [#allocation4], %s203
        %s205 = sand.u32 %s68, 1
        %s206 = smul.addr %s205, 8
        %s207 = scalar_lea.vmem [#allocation5], %s206
        // Predicated region
        $region29: #{tpu_custom_call.1} parent=23 // pred_check
          %p208 = pneg %p78
        $region30: #{tpu_custom_call.1} parent=23 // pred_check_branch
          %210 = sbr.rel (%p208) target = $region32
        $region31: #{tpu_custom_call.1} parent=23 // pred_region
          %s212 = ssub.s32 128, 128
          %213 = vsyncadd %s204, %s212
          %s214 = smul.addr %s22, 4
          %s215 = sadd.s32 %s23, %s214
          %s216 = smul.addr %s215, 32
          %s217 = scalar_lea.hbm %s1, %s216
          %s218 = sshll.u32 %s207, 4
          %s219 = int_to_ptr.vmem [resolvable:$true] %s218
          %224 = dma.vmem_to_hbm [thread:$0]  %s219, 128, %s217, %s204, 32, 32, 2
        $region32: #{tpu_custom_call.1} parent=23 // pred_fallthru
          _
      $region24: #{tpu_custom_call.1} parent=5 // pred_fallthru
        _
      %p225 = scmp.le.s32.totalorder 2, %s13
      // Predicated region
      $region33: #{tpu_custom_call.1} parent=5 // pred_check
        %p226 = pneg %p225
      $region34: #{tpu_custom_call.1} parent=5 // pred_check_branch
        %228 = sbr.rel (%p226) target = $region36
      $region35: #{tpu_custom_call.1} parent=5 // pred_region
        %s229 = ssub.s32 %s13, 2
        // Predicated region
        $region37: #{tpu_custom_call.1} parent=35 // pred_check
          %p230 = pneg %p84
        $region38: #{tpu_custom_call.1} parent=35 // pred_check_branch
          %232 = sbr.rel (%p230) target = $region40
        $region39: #{tpu_custom_call.1} parent=35 // pred_region
          %s233 = sand.u32 %s69, 1
          %s234 = scalar_lea.sflag [#allocation4], %s233
          %s235 = sand.u32 %s69, 1
          %s236 = smul.addr %s235, 8
          %s237 = scalar_lea.vmem [#allocation5], %s236
          %238 = dma.done %s234, 128
        $region40: #{tpu_custom_call.1} parent=35 // pred_fallthru
          _
      $region36: #{tpu_custom_call.1} parent=5 // pred_fallthru
        _
    $region6: #{tpu_custom_call.1} parent=1 // loop_footer
      %s17 = sadd.s32 1, %s13
    $region7: #{tpu_custom_call.1} parent=1 // loop_footer_branch
      %12 = sbr.rel target = $region3
    $region8: #{tpu_custom_call.1} parent=1 // loop_exit
      _
    %239 = vsyncpa [#allocation3], 1
    %s240 = scalar_lea.sflag [#allocation3], 1
    %241 = vsyncpa %s240, 1
    %242 = vsyncpa [#allocation4], 1
    %s243 = scalar_lea.sflag [#allocation4], 1
    %244 = vsyncpa %s243, 1

</llo_original>
